<compile_context>
chip_gen: v7x
topology: tpu7x:2x2x1
jax: 0.10.0
libtpu: 0.0.40
codegen_flags: <defaults>
</compile_context>

<pallas_src>
import jax
import jax.numpy as jnp
from jax.experimental import pallas as pl
from jax.experimental.pallas import tpu as pltpu


def _attention_kernel(enc_ref, h_ref, out_ref):
    # enc_ref: (S, Bblk, E)  encoder block in the original (S, B, E) layout
    # h_ref:   (Bblk, E)     last decoder hidden state for this batch block
    # out_ref: (Bblk, E)     attention context vectors
    S, Bblk, E = enc_ref.shape

    enc = enc_ref[...]                               # native dtype, one VMEM load
    hv = h_ref[...].astype(jnp.float32)              # (Bblk, E), f32

    # prod[s, b, e] = enc[s, b, e] * h[b, e]; f32 via type promotion (no
    # separate whole-block f32 copy of enc is materialized).
    prod = enc * hv[None, :, :]                      # (S, Bblk, E), f32

    if Bblk % 8 == 0:
        # E (lane) reduction on the MXU via a ones-vector dot. The reshape is
        # layout-preserving (Bblk sublane-aligned, lane dim E unchanged) and
        # the (S*Bblk, 1) result drops straight into the (S, Bblk, 1) layout
        # the weighted sum wants -- no XLU transpose, XLU stays free.
        ones = jnp.ones((E, 1), jnp.float32)
        scores = jnp.dot(
            prod.reshape(S * Bblk, E), ones,
            preferred_element_type=jnp.float32,
        ).reshape(S, Bblk, 1)
    else:
        # Small / unaligned batch block (e.g. the toy test): plain lane reduce.
        scores = jnp.sum(prod, axis=-1, keepdims=True)   # (S, Bblk, 1)

    # Numerically stable softmax over the sequence axis (axis 0), all f32.
    m = jnp.max(scores, axis=0, keepdims=True)       # (1, Bblk, 1)
    e = jnp.exp(scores - m)                          # (S, Bblk, 1)
    denom = jnp.sum(e, axis=0, keepdims=True)        # (1, Bblk, 1)
    w = e / denom                                    # exact division (approx
                                                     # reciprocal failed tol)

    # context[b, :] = sum_s w[s, b] * enc[s, b, :]   (reduce over the major
    # axis -> pure VPU accumulation in f32; w already batch-on-sublanes).
    ctx = jnp.sum(enc * w, axis=0)                   # (Bblk, E), f32
    out_ref[...] = ctx.astype(out_ref.dtype)


def _vmem_budget_bytes():
    """Per-kernel VMEM budget derived from the chip generation."""
    try:
        vmem = int(pltpu.get_tpu_info().vmem_capacity_bytes)
    except Exception:  # interpret mode / query unavailable: assume v7x-sized.
        vmem = 64 * 1024 * 1024
    if vmem >= 96 * 1024 * 1024:
        # v5e / v6e (128 MiB physical): use most of it for bigger blocks.
        return 100 * 1024 * 1024
    # v7x (64 MiB physical) and smaller: cap around 40 MiB for headroom.
    return min(40 * 1024 * 1024, (vmem * 3) // 5)


def _pick_batch_block(S, B, E, itemsize, limit_bytes):
    """Batch block size: biggest that truly fits, but keep the grid multi-step."""
    # Real per-batch-row residency of one grid step: the enc block is
    # double-buffered in its native dtype, plus ~2 full-size f32 elementwise
    # product temporaries (prod and enc*w); h/out rows are tiny.
    per_row = S * E * (2 * itemsize + 2 * 4) + 8 * E * 4
    cap = max(1, limit_bytes // per_row)
    if cap >= B:
        b_block = B
    else:
        # TODO(synk): if even an 8-row block exceeds the budget (huge S*E),
        # the flash-style S-tiled path is required; this fallback assumes it fits.
        b_block = min(B, max(8, (cap // 8) * 8))

    # Keep >= 4 grid steps when B permits so double-buffering hides the enc
    # DMA (and both v7x TensorCores get work), but never shrink a block below
    # ~512 KiB of enc data (per-step overhead ~0.35us would start to show).
    min_block_bytes = 512 * 1024
    target_steps = 4
    while (
        b_block > 8
        and pl.cdiv(B, b_block) < target_steps
        and (b_block // 2) * S * E * itemsize >= min_block_bytes
    ):
        half = max(8, (((b_block // 2) + 7) // 8) * 8)
        if half >= b_block:
            break
        b_block = half
    return b_block


def attention(enc_seq, h, *, b_block=None):
    """enc_seq: (S, B, E), h: (L, B, E) -> (B, E)"""
    S, B, E = enc_seq.shape
    h_last = h[-1]                                   # (B, E), cheap slice

    limit_bytes = _vmem_budget_bytes()
    if b_block is None:
        b_block = _pick_batch_block(S, B, E, enc_seq.dtype.itemsize, limit_bytes)
    b_block = max(1, min(b_block, B))
    grid = (pl.cdiv(B, b_block),)

    itemsize = enc_seq.dtype.itemsize
    cost = pl.CostEstimate(
        flops=4 * S * B * E,
        transcendentals=S * B,
        bytes_accessed=S * B * E * itemsize + 2 * B * E * itemsize,
    )

    # Note: for production shapes keep E a multiple of 128 so the (Bblk, E)
    # output stores are unmasked, lane-dense vst.
    return pl.pallas_call(
        _attention_kernel,
        out_shape=jax.ShapeDtypeStruct((B, E), enc_seq.dtype),
        grid=grid,
        in_specs=[
            # Index the original (S, B, E) layout directly: no HBM transpose,
            # enc is streamed from HBM exactly once.
            pl.BlockSpec((S, b_block, E), lambda i: (0, i, 0)),
            pl.BlockSpec((b_block, E), lambda i: (i, 0)),
        ],
        out_specs=pl.BlockSpec((b_block, E), lambda i: (i, 0)),
        compiler_params=pltpu.CompilerParams(
            dimension_semantics=("parallel",),
            vmem_limit_bytes=int(limit_bytes),
        ),
        cost_estimate=cost,
    )(enc_seq, h_last)


def _attention_ref(enc_seq, h):
    # Pure-JAX reference mirroring the PyTorch forward.
    scores = jnp.einsum("sbe,be->bs", enc_seq, h[-1])          # (B, S)
    weights = jax.nn.softmax(scores, axis=1)                   # (B, S)
    return jnp.sum(enc_seq * weights.T[:, :, None], axis=0)    # (B, E)


if __name__ == "__main__":
    S, B, E, L = 8, 2, 32, 2
    key = jax.random.PRNGKey(0)
    k1, k2 = jax.random.split(key)
    enc_seq = jax.random.normal(k1, (S, B, E), dtype=jnp.float32)
    h = jax.random.normal(k2, (L, B, E), dtype=jnp.float32)

    out = attention(enc_seq, h)
    jax.block_until_ready(out)

    ref = _attention_ref(enc_seq, h)
    assert out.shape == (B, E)
    err = float(jnp.max(jnp.abs(out - ref)))
    assert jnp.allclose(out, ref, atol=1e-3, rtol=1e-3), err
    print("KERNEL_OK")
</pallas_src>

<mosaic_0001>
module attributes {stable_mosaic.version = 11 : i64} {
  func.func @_attention_kernel(%arg0: i32, %arg1: memref<8x2x32xf32, #tpu.memory_space<vmem>>, %arg2: memref<2x32xf32, #tpu.memory_space<vmem>>, %arg3: memref<2x32xf32, #tpu.memory_space<vmem>>) attributes {dimension_semantics = [#tpu.dimension_semantics<parallel>], iteration_bounds = array<i64: 1>, scalar_prefetch = 0 : i64, scratch_operands = 0 : i64, tpu.core_type = #tpu.core_type<tc>, window_params = [{transform_indices = @transform_0, window_bounds = array<i64: 8, 2, 32>}, {transform_indices = @transform_1, window_bounds = array<i64: 2, 32>}, {transform_indices = @transform_2, window_bounds = array<i64: 2, 32>}]} {
    %c0 = arith.constant 0 : index
    %c0_0 = arith.constant 0 : index
    %c0_1 = arith.constant 0 : index
    %0 = vector.load %arg1[%c0, %c0_0, %c0_1] : memref<8x2x32xf32, #tpu.memory_space<vmem>>, vector<8x2x32xf32>
    %c0_2 = arith.constant 0 : index
    %c0_3 = arith.constant 0 : index
    %1 = vector.load %arg2[%c0_2, %c0_3] : memref<2x32xf32, #tpu.memory_space<vmem>>, vector<2x32xf32>
    %2 = vector.shape_cast %1 : vector<2x32xf32> to vector<1x2x32xf32>
    %3 = vector.broadcast %2 : vector<1x2x32xf32> to vector<8x2x32xf32>
    %4 = arith.mulf %0, %3 : vector<8x2x32xf32>
    %cst = arith.constant dense<0.000000e+00> : vector<8x2xf32>
    %5 = vector.multi_reduction <add>, %4, %cst [2] : vector<8x2x32xf32> to vector<8x2xf32>
    %6 = vector.shape_cast %5 : vector<8x2xf32> to vector<8x2x1xf32>
    %cst_4 = arith.constant dense<0xFF800000> : vector<2x1xf32>
    %7 = vector.multi_reduction <maximumf>, %6, %cst_4 [0] : vector<8x2x1xf32> to vector<2x1xf32>
    %8 = vector.shape_cast %7 : vector<2x1xf32> to vector<1x2x1xf32>
    %9 = vector.broadcast %8 : vector<1x2x1xf32> to vector<8x2x1xf32>
    %10 = arith.subf %6, %9 : vector<8x2x1xf32>
    %11 = math.exp %10 : vector<8x2x1xf32>
    %cst_5 = arith.constant dense<0.000000e+00> : vector<2x1xf32>
    %12 = vector.multi_reduction <add>, %11, %cst_5 [0] : vector<8x2x1xf32> to vector<2x1xf32>
    %13 = vector.shape_cast %12 : vector<2x1xf32> to vector<1x2x1xf32>
    %14 = vector.broadcast %13 : vector<1x2x1xf32> to vector<8x2x1xf32>
    %15 = arith.divf %11, %14 : vector<8x2x1xf32>
    %16 = vector.broadcast %15 : vector<8x2x1xf32> to vector<8x2x32xf32>
    %17 = arith.mulf %0, %16 : vector<8x2x32xf32>
    %cst_6 = arith.constant dense<0.000000e+00> : vector<2x32xf32>
    %18 = vector.multi_reduction <add>, %17, %cst_6 [0] : vector<8x2x32xf32> to vector<2x32xf32>
    %c0_7 = arith.constant 0 : index
    %c0_8 = arith.constant 0 : index
    %19 = vector.load %arg3[%c0_7, %c0_8] : memref<2x32xf32, #tpu.memory_space<vmem>>, vector<2x32xf32>
    tpu.vector_store %arg3[%c0_7, %c0_8], %18 {strides = array<i32>} : memref<2x32xf32, #tpu.memory_space<vmem>>, vector<2x32xf32>,
    return
  }
  func.func @transform_0(%arg0: i32) -> (i32, i32, i32) {
    %c0_i32 = arith.constant 0 : i32
    %c0_i32_0 = arith.constant 0 : i32
    %c0_i32_1 = arith.constant 0 : i32
    return %c0_i32, %arg0, %c0_i32_0 : i32, i32, i32
  }
  func.func @transform_1(%arg0: i32) -> (i32, i32) {
    %c0_i32 = arith.constant 0 : i32
    %c0_i32_0 = arith.constant 0 : i32
    return %arg0, %c0_i32 : i32, i32
  }
  func.func @transform_2(%arg0: i32) -> (i32, i32) {
    %c0_i32 = arith.constant 0 : i32
    %c0_i32_0 = arith.constant 0 : i32
    return %arg0, %c0_i32 : i32, i32
  }
}

</mosaic_0001>

<llo_original>
// kernel: tpu_custom_call.1
$region0: #{tpu_custom_call.1}
  #allocation0 [shape = 'u32[]', space=smem, size = 0x4, offset = 0x4, fixed_abs, tag = 'smem constant byte address 0x4 - core index']
  #allocation1 [shape = 'u32[144,128]{1,0:T(1,128)}', space=vmem, size = 0x12000, scoped, tag = 'internal scratch']
  %s0 = inlined_call_operand.hbm [shape: f32[8,2,32], index: 0, kind: input, shape index: {}]
  %s1 = inlined_call_operand.vmem [shape: f32[2,32], index: 1, kind: input, shape index: {}]
  %s2 = inlined_call_operand.hbm [shape: f32[2,32], index: 2, kind: output, shape index: {}]
  %s3 = sld [smem:[#allocation0]]
  $region22: #{tpu_custom_call.1} parent=0
    _
  %s5 = ssub.s32 1, %s3
  %s6 = scalar_select 0, %s5, %s3
  $region1: #{tpu_custom_call.1} parent=0
    #allocation2 [shape = 'u8[8192]{0}', space=vmem, size = 0x2000, scoped, tag = 'input window, operand 0, single buffered']
    #allocation3 [shape = 's32[1]{0}', space=sflag, size = 0x4, scoped, tag = 'scoped memory for tpu_custom_call.1']
    #allocation4 [shape = 's32[1]{0}', space=sflag, size = 0x4, scoped, tag = 'scoped memory for tpu_custom_call.1']
    #allocation5 [shape = 'u8[1024]{0}', space=vmem, size = 0x400, scoped, tag = 'output window, operand 0, single buffered']
    %7 = vsyncpa [#allocation3], 0
    %8 = vsyncpa [#allocation4], 0
    // Predicated region
    $region2: #{tpu_custom_call.1} parent=1 // pred_check
      _
    $region3: #{tpu_custom_call.1} parent=1 // pred_check_branch
      %10 = sbr.rel (0) target = $region5
    $region4: #{tpu_custom_call.1} parent=1 // pred_region
      %s12 = ssub.s32 256, 256
      %13 = vsyncadd [#allocation3], %s12
      %s14 = sshll.u32 [#allocation2], 4
      %s15 = int_to_ptr.vmem [resolvable:$true] %s14
      %20 = dma.hbm_to_vmem [thread:$0]  %s0, 256, %s15, [#allocation3], 32, 32, 2
    $region5: #{tpu_custom_call.1} parent=1 // pred_fallthru
      _
    // Predicated region
    $region6: #{tpu_custom_call.1} parent=1 // pred_check
      _
    $region7: #{tpu_custom_call.1} parent=1 // pred_check_branch
      %22 = sbr.rel (0) target = $region9
    $region8: #{tpu_custom_call.1} parent=1 // pred_region
      _
    $region9: #{tpu_custom_call.1} parent=1 // pred_fallthru
      _
    // Predicated region
    $region10: #{tpu_custom_call.1} parent=1 // pred_check
      _
    $region11: #{tpu_custom_call.1} parent=1 // pred_check_branch
      %24 = sbr.rel (0) target = $region13
    $region12: #{tpu_custom_call.1} parent=1 // pred_region
      %25 = dma.done [#allocation3], 256
    $region13: #{tpu_custom_call.1} parent=1 // pred_fallthru
      _
    %v26 = vld [vmem:[#allocation2] sm:$0x3]
    %v27 = vld [vmem:[#allocation2 + $0x2] sm:$0x3]
    %v28 = vld [vmem:[#allocation2 + $0x4] sm:$0x3]
    %v29 = vld [vmem:[#allocation2 + $0x6] sm:$0x3]
    %v30 = vld [vmem:[#allocation2 + $0x8] sm:$0x3]
    %v31 = vld [vmem:[#allocation2 + $0xa] sm:$0x3]
    %v32 = vld [vmem:[#allocation2 + $0xc] sm:$0x3]
    %v33 = vld [vmem:[#allocation2 + $0xe] sm:$0x3]
    %v34 = vld [vmem:[%s1] sm:$0x3]
    %v35 = vmul.f32 %v26, %v34
    %v36 = vmul.f32 %v27, %v34
    %v37 = vmul.f32 %v28, %v34
    %v38 = vmul.f32 %v29, %v34
    %v39 = vmul.f32 %v30, %v34
    %v40 = vmul.f32 %v31, %v34
    %v41 = vmul.f32 %v32, %v34
    %v42 = vmul.f32 %v33, %v34
    %vm43 = vcmask 254976
    %v44 = vsel %vm43, %v35, 0.0
    %45 = vadd.xlane.f32.xlu0 %v44
    %v46 = vpop.xlane.xlu0 %45
    %v47 = vsel %vm43, %v36, 0.0
    %48 = vadd.xlane.f32.xlu0 %v47
    %v49 = vpop.xlane.xlu0 %48
    %v50 = vsel %vm43, %v37, 0.0
    %51 = vadd.xlane.f32.xlu0 %v50
    %v52 = vpop.xlane.xlu0 %51
    %v53 = vsel %vm43, %v38, 0.0
    %54 = vadd.xlane.f32.xlu0 %v53
    %v55 = vpop.xlane.xlu0 %54
    %v56 = vsel %vm43, %v39, 0.0
    %57 = vadd.xlane.f32.xlu0 %v56
    %v58 = vpop.xlane.xlu0 %57
    %v59 = vsel %vm43, %v40, 0.0
    %60 = vadd.xlane.f32.xlu0 %v59
    %v61 = vpop.xlane.xlu0 %60
    %v62 = vsel %vm43, %v41, 0.0
    %63 = vadd.xlane.f32.xlu0 %v62
    %v64 = vpop.xlane.xlu0 %63
    %v65 = vsel %vm43, %v42, 0.0
    %66 = vadd.xlane.f32.xlu0 %v65
    %v67 = vpop.xlane.xlu0 %66
    %vm68 = vcmask 1041408
    %v69 = vsel %vm68, %v46, -inf
    %v70 = vsel %vm68, %v49, -inf
    %v71 = vsel %vm68, %v52, -inf
    %v72 = vsel %vm68, %v55, -inf
    %v73 = vsel %vm68, %v58, -inf
    %v74 = vmax.f32 %v69, %v73
    %v75 = vsel %vm68, %v61, -inf
    %v76 = vmax.f32 %v70, %v75
    %v77 = vsel %vm68, %v64, -inf
    %v78 = vmax.f32 %v71, %v77
    %v79 = vsel %vm68, %v67, -inf
    %v80 = vmax.f32 %v72, %v79
    %v81 = vmax.f32 %v74, %v76
    %v82 = vmax.f32 %v78, %v80
    %v83 = vmax.f32 %v81, %v82
    %v84 = vsub.f32 %v46, %v83
    %v85 = vsub.f32 %v49, %v83
    %v86 = vsub.f32 %v52, %v83
    %v87 = vsub.f32 %v55, %v83
    %v88 = vsub.f32 %v58, %v83
    %v89 = vsub.f32 %v61, %v83
    %v90 = vsub.f32 %v64, %v83
    %v91 = vsub.f32 %v67, %v83
    %v92 = vmul.f32 %v84, 1.442695
    %v93 = vpow.pop %v92
    %v94 = vmul.f32 %v85, 1.442695
    %v95 = vpow.pop %v94
    %v96 = vmul.f32 %v86, 1.442695
    %v97 = vpow.pop %v96
    %v98 = vmul.f32 %v87, 1.442695
    %v99 = vpow.pop %v98
    %v100 = vmul.f32 %v88, 1.442695
    %v101 = vpow.pop %v100
    %v102 = vmul.f32 %v89, 1.442695
    %v103 = vpow.pop %v102
    %v104 = vmul.f32 %v90, 1.442695
    %v105 = vpow.pop %v104
    %v106 = vmul.f32 %v91, 1.442695
    %v107 = vpow.pop %v106
    %v108 = vsel %vm68, %v93, 0.0
    %v109 = vsel %vm68, %v95, 0.0
    %v110 = vadd.f32 %v108, %v109
    %v111 = vsel %vm68, %v97, 0.0
    %v112 = vadd.f32 %v110, %v111
    %v113 = vsel %vm68, %v99, 0.0
    %v114 = vadd.f32 %v112, %v113
    %v115 = vsel %vm68, %v101, 0.0
    %v116 = vadd.f32 %v114, %v115
    %v117 = vsel %vm68, %v103, 0.0
    %v118 = vadd.f32 %v116, %v117
    %v119 = vsel %vm68, %v105, 0.0
    %v120 = vadd.f32 %v118, %v119
    %v121 = vsel %vm68, %v107, 0.0
    %v122 = vadd.f32 %v120, %v121
    %v123 = vrcp.pop %v122
    %v124 = vmul.f32 %v93, %v123
    %v125 = vmul.f32 %v95, %v123
    %v126 = vmul.f32 %v97, %v123
    %v127 = vmul.f32 %v99, %v123
    %v128 = vmul.f32 %v101, %v123
    %v129 = vmul.f32 %v103, %v123
    %v130 = vmul.f32 %v105, %v123
    %v131 = vmul.f32 %v107, %v123
    %v132 = vmul.f32 %v26, %v124
    %v133 = vmul.f32 %v27, %v125
    %v134 = vmul.f32 %v28, %v126
    %v135 = vmul.f32 %v29, %v127
    %v136 = vmul.f32 %v30, %v128
    %v137 = vmul.f32 %v31, %v129
    %v138 = vmul.f32 %v32, %v130
    %v139 = vmul.f32 %v33, %v131
    %v140 = vsel %vm43, %v132, 0.0
    %v141 = vsel %vm43, %v133, 0.0
    %v142 = vadd.f32 %v140, %v141
    %v143 = vsel %vm43, %v134, 0.0
    %v144 = vadd.f32 %v142, %v143
    %v145 = vsel %vm43, %v135, 0.0
    %v146 = vadd.f32 %v144, %v145
    %v147 = vsel %vm43, %v136, 0.0
    %v148 = vadd.f32 %v146, %v147
    %v149 = vsel %vm43, %v137, 0.0
    %v150 = vadd.f32 %v148, %v149
    %v151 = vsel %vm43, %v138, 0.0
    %v152 = vadd.f32 %v150, %v151
    %v153 = vsel %vm43, %v139, 0.0
    %v154 = vadd.f32 %v152, %v153
    %155 = vst.msk [vmem:[#allocation5] sm:$0x3] %vm43, %v154
    // Predicated region
    $region14: #{tpu_custom_call.1} parent=1 // pred_check
      _
    $region15: #{tpu_custom_call.1} parent=1 // pred_check_branch
      %157 = sbr.rel (0) target = $region17
    $region16: #{tpu_custom_call.1} parent=1 // pred_region
      %s159 = ssub.s32 32, 32
      %160 = vsyncadd [#allocation4], %s159
      %s162 = sshll.u32 [#allocation5], 4
      %s163 = int_to_ptr.vmem [resolvable:$true] %s162
      %165 = dma.vmem_to_hbm [thread:$0]  %s163, 32, %s2, [#allocation4]
    $region17: #{tpu_custom_call.1} parent=1 // pred_fallthru
      _
    // Predicated region
    $region18: #{tpu_custom_call.1} parent=1 // pred_check
      _
    $region19: #{tpu_custom_call.1} parent=1 // pred_check_branch
      %167 = sbr.rel (0) target = $region21
    $region20: #{tpu_custom_call.1} parent=1 // pred_region
      %168 = dma.done [#allocation4], 32
    $region21: #{tpu_custom_call.1} parent=1 // pred_fallthru
      _
    %169 = vsyncpa [#allocation3], 1
    %170 = vsyncpa [#allocation4], 1

</llo_original>
